<compile_context>
chip_gen: v7x
topology: tpu7x:2x2x1
jax: 0.10.0
libtpu: 0.0.40
codegen_flags: <defaults>
</compile_context>

<pallas_src>
import functools

import jax
import jax.numpy as jnp
from jax import lax
from jax.experimental import pallas as pl
from jax.experimental.pallas import tpu as pltpu
import numpy as np


_NEG_BIG = -1e30    # finite stand-in for -inf (masked rows / running-max init)
_EXP_CLAMP = 85.0   # just under float32 exp overflow (~88.7)


def _softplus_neg(z):
    """softplus(-z), numerically stable: max(-z, 0) + log1p(exp(-|z|))."""
    return jnp.maximum(-z, 0.0) + jnp.log1p(jnp.exp(-jnp.abs(z)))


def _min_gru_kernel(x_ref, w_ref, out_ref,
                    ca_ref, cm_ref, cs_ref, tril_f_ref, tril_s_ref,
                    *, seq_len):
    # x_ref:      (1, Tc, D)   bf16
    # w_ref:      (D, 2*Dc)    bf16; columns = [w_h chunk | w_g chunk]
    # out_ref:    (1, Tc, Dc)  f32 (or bf16)
    # ca/cm/cs:   (1, Dc)      f32 scan carries (a_star offset, running max, scaled sum)
    # tril_f/s:   (Tc, Tc)     lower-triangular ones (f32 / scan-matmul dtype),
    #                          built once per (b, j) at t == 0.
    t = pl.program_id(2)
    Tc = out_ref.shape[1]
    Dc = out_ref.shape[2]

    @pl.when(t == 0)
    def _init():
        ca_ref[...] = jnp.zeros((1, Dc), jnp.float32)
        cm_ref[...] = jnp.full((1, Dc), _NEG_BIG, jnp.float32)
        cs_ref[...] = jnp.zeros((1, Dc), jnp.float32)
        row = lax.broadcasted_iota(jnp.int32, (Tc, Tc), 0)
        col = lax.broadcasted_iota(jnp.int32, (Tc, Tc), 1)
        tril = jnp.where(row >= col, 1.0, 0.0)
        tril_f_ref[...] = tril
        tril_s_ref[...] = tril.astype(tril_s_ref.dtype)

    # Fused hidden/gate projection: single MXU matmul, bf16 in, f32 accumulate.
    hg = jnp.dot(x_ref[0], w_ref[...], preferred_element_type=jnp.float32)  # (Tc, 2*Dc)
    hidden = hg[:, :Dc]      # clean lane slice (Dc is a multiple of 128)
    gate = hg[:, Dc:]

    # One softplus pass: log_z = -softplus(-gate); log_coeffs = log_z - gate
    # (uses softplus(g) = g + softplus(-g)).
    log_z = -_softplus_neg(gate)
    log_coeffs = log_z - gate
    # log_g(hidden) = where(h >= 0, log(relu(h) + 0.5), -softplus(-h))
    log_tilde_h = jnp.where(
        hidden >= 0.0,
        jnp.log(jnp.maximum(hidden, 0.0) + 0.5),
        -_softplus_neg(hidden),
    )
    log_values = log_z + log_tilde_h

    # Chunk-local cumulative sum (f32 MXU matmul), offset by the carried prefix.
    a_star = (jnp.dot(tril_f_ref[...], log_coeffs,
                      preferred_element_type=jnp.float32) + ca_ref[...])

    # Mask padded timesteps (global row index >= seq_len) so they contribute
    # neither to the running max nor to the scaled sum.
    row_idx = t * Tc + lax.broadcasted_iota(jnp.int32, (Tc, Dc), 0)
    shifted = jnp.where(row_idx < seq_len, log_values - a_star, _NEG_BIG)

    # Chunked logcumsumexp with carried (running max, running scaled sum).
    m_prev = cm_ref[...]
    m_new = jnp.maximum(m_prev, jnp.max(shifted, axis=0, keepdims=True))
    s_prev = cs_ref[...] * jnp.exp(m_prev - m_new)
    p = jnp.exp(shifted - m_new)
    # Scan matmul in bf16 (p in [0,1], ones exact in bf16), f32 accumulation.
    csum = (jnp.dot(tril_s_ref[...], p.astype(tril_s_ref.dtype),
                    preferred_element_type=jnp.float32) + s_prev)

    # Fused finalize: out = csum * exp(a_star + m_new) (one transcendental
    # instead of log + exp).  Exponent clamped so the rare csum-underflow /
    # exponent-overflow corner yields 0 instead of NaN (matches log-form).
    out = csum * jnp.exp(jnp.minimum(a_star + m_new, _EXP_CLAMP))
    out_ref[0] = out.astype(out_ref.dtype)

    # Carry the scan state at the last row of this chunk.
    ca_ref[...] = a_star[Tc - 1:Tc, :]
    cm_ref[...] = m_new
    cs_ref[...] = csum[Tc - 1:Tc, :]


def _round_up(a, m):
    return (a + m - 1) // m * m


def _vmem_limit_bytes():
    # Generation-aware VMEM limit: v5e/v6e -> 96 MiB, v7x (64 MiB phys) -> 48 MiB.
    try:
        cap = int(pltpu.get_tpu_info().vmem_capacity_bytes)
    except Exception:
        cap = 64 * 1024 * 1024
    return min(cap * 3 // 4, 96 * 1024 * 1024)


def min_gru_forward(x, w_h, w_g, *,
                    matmul_dtype=jnp.bfloat16,
                    scan_matmul_dtype=jnp.bfloat16,
                    out_dtype=jnp.float32,
                    max_seq_chunk=256,
                    max_feat_chunk=1024):
    """MinGRU forward (prev_hidden=None, seq_len > 1 path).

    x: (B, T, D) f32;  w_h, w_g: (D, Di) f32 (halves of to_hidden_and_gate.T).
    Returns (out, next_prev_hidden): (B, T, Di) and (B, 1, Di).
    """
    B, T, D = x.shape
    Di = w_h.shape[1]

    vmem_limit = _vmem_limit_bytes()

    # Feature (lane) tiling: pad Di to a multiple of 128.
    Di_pad = _round_up(Di, 128)

    # Sequence (sublane) tiling: multiple of 16 (bf16 packs 16 sublanes/vreg),
    # sized so the last chunk is not mostly padding.
    Tn_target = -(-T // max_seq_chunk)                  # ceil(T / max_seq_chunk)
    Tc = _round_up(-(-T // Tn_target), 16)
    Tc = min(Tc, _round_up(max_seq_chunk, 16))
    T_pad = _round_up(T, Tc)
    Tn = T_pad // Tc

    # Feature-chunk width: largest 128-multiple divisor of Di_pad whose
    # (double-buffered blocks + f32 temporaries) footprint fits the budget.
    out_bytes = jnp.dtype(out_dtype).itemsize

    def footprint(dc):
        io = 2 * (D * 2 * dc * 2 + Tc * D * 2 + Tc * dc * out_bytes)
        tmp = Tc * 2 * dc * 4 + 8 * Tc * dc * 4 + Tc * Tc * 6 + 3 * dc * 4
        return io + tmp

    budget = int(vmem_limit * 0.6)

    def pick_dc(limit):
        for cand in (1024, 512, 256, 128):
            if (cand <= limit and cand <= Di_pad and Di_pad % cand == 0
                    and footprint(cand) <= budget):
                return cand
        return 128

    Dc = pick_dc(min(max_feat_chunk, Di_pad))
    # Multi-TensorCore chips (v7x) need >= 2 units of parallel grid work: with
    # B == 1, split the feature axis so (B, Dj) covers both cores.
    if B == 1 and Di_pad >= 256 and Di_pad // Dc < 2:
        Dc = pick_dc(Di_pad // 2)
    Dj = Di_pad // Dc

    # Fused weight: feature chunk j occupies columns [j*2*Dc, (j+1)*2*Dc) as
    # [w_h chunk j | w_g chunk j].  Zero-padded feature columns stay finite
    # through the log-space math and are sliced off below.
    wh_p = jnp.pad(w_h, ((0, 0), (0, Di_pad - Di))).reshape(D, Dj, Dc)
    wg_p = jnp.pad(w_g, ((0, 0), (0, Di_pad - Di))).reshape(D, Dj, Dc)
    w_fused = jnp.concatenate([wh_p, wg_p], axis=2).reshape(D, 2 * Di_pad)
    w_fused = w_fused.astype(matmul_dtype)

    x_p = jnp.pad(x, ((0, 0), (0, T_pad - T), (0, 0))).astype(matmul_dtype)

    kernel = functools.partial(_min_gru_kernel, seq_len=T)

    grid_spec = pltpu.PrefetchScalarGridSpec(
        num_scalar_prefetch=0,
        grid=(B, Dj, Tn),
        in_specs=[
            pl.BlockSpec((1, Tc, D), lambda b, j, t: (b, t, 0)),
            pl.BlockSpec((D, 2 * Dc), lambda b, j, t: (0, j)),
        ],
        out_specs=pl.BlockSpec((1, Tc, Dc), lambda b, j, t: (b, t, j)),
        scratch_shapes=[
            pltpu.VMEM((1, Dc), jnp.float32),          # carried a_star offset
            pltpu.VMEM((1, Dc), jnp.float32),          # carried running max
            pltpu.VMEM((1, Dc), jnp.float32),          # carried scaled sum
            pltpu.VMEM((Tc, Tc), jnp.float32),         # lower-tri ones, f32
            pltpu.VMEM((Tc, Tc), scan_matmul_dtype),   # lower-tri ones, scan dtype
        ],
    )
    out_pad = pl.pallas_call(
        kernel,
        out_shape=jax.ShapeDtypeStruct((B, T_pad, Di_pad), out_dtype),
        grid_spec=grid_spec,
        compiler_params=pltpu.CompilerParams(
            dimension_semantics=("parallel", "parallel", "arbitrary"),
            vmem_limit_bytes=vmem_limit,
        ),
    )(x_p, w_fused)

    out = out_pad[:, :T, :Di]
    next_prev_hidden = out[:, T - 1:T, :]
    return out, next_prev_hidden


def min_gru_reference(x, w_h, w_g, matmul_dtype=None):
    """Pure-JAX reference mirroring the PyTorch forward (prev_hidden=None)."""
    if matmul_dtype is None:
        hidden = jnp.einsum("btd,de->bte", x, w_h)
        gate = jnp.einsum("btd,de->bte", x, w_g)
    else:
        hidden = jnp.einsum("btd,de->bte", x.astype(matmul_dtype),
                            w_h.astype(matmul_dtype),
                            preferred_element_type=jnp.float32)
        gate = jnp.einsum("btd,de->bte", x.astype(matmul_dtype),
                          w_g.astype(matmul_dtype),
                          preferred_element_type=jnp.float32)
    log_coeffs = -jax.nn.softplus(gate)
    log_z = -jax.nn.softplus(-gate)
    log_tilde_h = jnp.where(hidden >= 0,
                            jnp.log(jax.nn.relu(hidden) + 0.5),
                            -jax.nn.softplus(-hidden))
    log_values = log_z + log_tilde_h
    a_star = jnp.cumsum(log_coeffs, axis=1)
    shifted = log_values - a_star
    m = jnp.max(shifted, axis=1, keepdims=True)
    log_cse = jnp.log(jnp.cumsum(jnp.exp(shifted - m), axis=1)) + m
    out = jnp.exp(a_star + log_cse)
    return out, out[:, -1:]


if __name__ == "__main__":
    B, T, dim = 2, 8, 32
    expansion_factor = 1.0
    dim_inner = int(dim * expansion_factor)

    key = jax.random.PRNGKey(0)
    kx, kw = jax.random.split(key)
    x = jax.random.normal(kx, (B, T, dim), dtype=jnp.float32)

    # nn.Linear(dim, 2*dim_inner, bias=False): weight shape (2*dim_inner, dim)
    W = jax.random.normal(kw, (2 * dim_inner, dim), dtype=jnp.float32) / jnp.sqrt(dim)
    w_h = W[:dim_inner].T   # (dim, dim_inner) -> hidden projection
    w_g = W[dim_inner:].T   # (dim, dim_inner) -> gate projection

    # References: same-bf16-projection ("quantized") and full-f32 module math.
    ref_out_q, ref_next_q = min_gru_reference(x, w_h, w_g, matmul_dtype=jnp.bfloat16)
    ref_out, ref_next = min_gru_reference(x, w_h, w_g)

    # Default (bf16 scan matmul) path.  Note T=8 < Tc=16 exercises the
    # padded-timestep masking path.
    out, next_prev_hidden = min_gru_forward(x, w_h, w_g)
    out = jax.block_until_ready(out)
    next_prev_hidden = jax.block_until_ready(next_prev_hidden)

    np.testing.assert_allclose(np.asarray(out), np.asarray(ref_out_q),
                               rtol=1e-2, atol=1e-2)
    np.testing.assert_allclose(np.asarray(next_prev_hidden), np.asarray(ref_next_q),
                               rtol=1e-2, atol=1e-2)
    np.testing.assert_allclose(np.asarray(out), np.asarray(ref_out),
                               rtol=1e-1, atol=1e-1)
    np.testing.assert_allclose(np.asarray(next_prev_hidden), np.asarray(ref_next),
                               rtol=1e-1, atol=1e-1)

    # f32 scan matmul path: tight check of the masked chunked scan itself.
    out32, next32 = min_gru_forward(x, w_h, w_g, scan_matmul_dtype=jnp.float32)
    out32 = jax.block_until_ready(out32)
    np.testing.assert_allclose(np.asarray(out32), np.asarray(ref_out_q),
                               rtol=1e-4, atol=1e-4)
    np.testing.assert_allclose(np.asarray(next32), np.asarray(ref_next_q),
                               rtol=1e-4, atol=1e-4)

    assert out.shape == (B, T, dim_inner)
    assert next_prev_hidden.shape == (B, 1, dim_inner)

    print("KERNEL_OK")
</pallas_src>

<mosaic_0001>
module attributes {stable_mosaic.version = 11 : i64} {
  func.func @_min_gru_kernel(%arg0: i32, %arg1: i32, %arg2: i32, %arg3: memref<1x16x32xbf16, #tpu.memory_space<vmem>>, %arg4: memref<32x256xbf16, #tpu.memory_space<vmem>>, %arg5: memref<1x16x128xf32, #tpu.memory_space<vmem>>, %arg6: memref<1x128xf32, #tpu.memory_space<vmem>>, %arg7: memref<1x128xf32, #tpu.memory_space<vmem>>, %arg8: memref<1x128xf32, #tpu.memory_space<vmem>>, %arg9: memref<16x16xf32, #tpu.memory_space<vmem>>, %arg10: memref<16x16xbf16, #tpu.memory_space<vmem>>) attributes {dimension_semantics = [#tpu.dimension_semantics<parallel>, #tpu.dimension_semantics<parallel>, #tpu.dimension_semantics<arbitrary>], iteration_bounds = array<i64: 2, 1, 1>, scalar_prefetch = 0 : i64, scratch_operands = 5 : i64, tpu.core_type = #tpu.core_type<tc>, window_params = [{transform_indices = @transform_0, window_bounds = array<i64: 1, 16, 32>}, {transform_indices = @transform_1, window_bounds = array<i64: 32, 256>}, {transform_indices = @transform_2, window_bounds = array<i64: 1, 16, 128>}]} {
    %c0_i32 = arith.constant 0 : i32
    %0 = arith.cmpi eq, %arg2, %c0_i32 : i32
    %1 = arith.extui %0 : i1 to i32
    %c0_i32_0 = arith.constant 0 : i32
    %2 = arith.cmpi ne, %1, %c0_i32_0 : i32
    scf.if %2 {
      %cst_40 = arith.constant 0.000000e+00 : f32
      %87 = vector.broadcast %cst_40 : f32 to vector<1x128xf32>
      %c0_41 = arith.constant 0 : index
      %c0_42 = arith.constant 0 : index
      %88 = vector.load %arg6[%c0_41, %c0_42] : memref<1x128xf32, #tpu.memory_space<vmem>>, vector<1x128xf32>
      tpu.vector_store %arg6[%c0_41, %c0_42], %87 {strides = array<i32>} : memref<1x128xf32, #tpu.memory_space<vmem>>, vector<1x128xf32>,
      %cst_43 = arith.constant -1.000000e+30 : f32
      %89 = vector.broadcast %cst_43 : f32 to vector<1x128xf32>
      %c0_44 = arith.constant 0 : index
      %c0_45 = arith.constant 0 : index
      %90 = vector.load %arg7[%c0_44, %c0_45] : memref<1x128xf32, #tpu.memory_space<vmem>>, vector<1x128xf32>
      tpu.vector_store %arg7[%c0_44, %c0_45], %89 {strides = array<i32>} : memref<1x128xf32, #tpu.memory_space<vmem>>, vector<1x128xf32>,
      %cst_46 = arith.constant 0.000000e+00 : f32
      %91 = vector.broadcast %cst_46 : f32 to vector<1x128xf32>
      %c0_47 = arith.constant 0 : index
      %c0_48 = arith.constant 0 : index
      %92 = vector.load %arg8[%c0_47, %c0_48] : memref<1x128xf32, #tpu.memory_space<vmem>>, vector<1x128xf32>
      tpu.vector_store %arg8[%c0_47, %c0_48], %91 {strides = array<i32>} : memref<1x128xf32, #tpu.memory_space<vmem>>, vector<1x128xf32>,
      %93 = tpu.iota {dimensions = array<i32: 0>} : vector<16x16xi32>
      %94 = tpu.iota {dimensions = array<i32: 1>} : vector<16x16xi32>
      %95 = arith.cmpi sge, %93, %94 : vector<16x16xi32>
      %cst_49 = arith.constant 1.000000e+00 : f32
      %cst_50 = arith.constant 0.000000e+00 : f32
      %96 = vector.broadcast %cst_49 : f32 to vector<16x16xf32>
      %97 = vector.broadcast %cst_50 : f32 to vector<16x16xf32>
      %98 = arith.select %95, %96, %97 : vector<16x16xi1>, vector<16x16xf32>
      %c0_51 = arith.constant 0 : index
      %c0_52 = arith.constant 0 : index
      %99 = vector.load %arg9[%c0_51, %c0_52] : memref<16x16xf32, #tpu.memory_space<vmem>>, vector<16x16xf32>
      tpu.vector_store %arg9[%c0_51, %c0_52], %98 {strides = array<i32>} : memref<16x16xf32, #tpu.memory_space<vmem>>, vector<16x16xf32>,
      %100 = arith.truncf %98 : vector<16x16xf32> to vector<16x16xbf16>
      %c0_53 = arith.constant 0 : index
      %c0_54 = arith.constant 0 : index
      %101 = vector.load %arg10[%c0_53, %c0_54] : memref<16x16xbf16, #tpu.memory_space<vmem>>, vector<16x16xbf16>
      tpu.vector_store %arg10[%c0_53, %c0_54], %100 {strides = array<i32>} : memref<16x16xbf16, #tpu.memory_space<vmem>>, vector<16x16xbf16>,
    } else {
    }
    %c0 = arith.constant 0 : index
    %c0_1 = arith.constant 0 : index
    %c0_2 = arith.constant 0 : index
    %3 = vector.load %arg3[%c0, %c0_1, %c0_2] : memref<1x16x32xbf16, #tpu.memory_space<vmem>>, vector<1x16x32xbf16>
    %4 = vector.shape_cast %3 : vector<1x16x32xbf16> to vector<16x32xbf16>
    %c0_3 = arith.constant 0 : index
    %c0_4 = arith.constant 0 : index
    %5 = vector.load %arg4[%c0_3, %c0_4] : memref<32x256xbf16, #tpu.memory_space<vmem>>, vector<32x256xbf16>
    %cst = arith.constant dense<0.000000e+00> : vector<16x256xf32>
    %6 = tpu.matmul %4, %5, %cst {dimension_numbers = #tpu.dot_dimension_numbers<[1], [0], [0], [1], [0, 0, 1, 1], [], []>} : vector<16x32xbf16>, vector<32x256xbf16>, vector<16x256xf32> -> vector<16x256xf32>
    %7 = vector.extract_strided_slice %6 {offsets = [0, 0], sizes = [16, 128], strides = [1, 1]} : vector<16x256xf32> to vector<16x128xf32>
    %8 = vector.extract_strided_slice %6 {offsets = [0, 128], sizes = [16, 128], strides = [1, 1]} : vector<16x256xf32> to vector<16x128xf32>
    %cst_5 = arith.constant 0.000000e+00 : f32
    %9 = vector.broadcast %cst_5 : f32 to vector<16x128xf32>
    %10 = arith.subf %9, %8 : vector<16x128xf32>
    %cst_6 = arith.constant 0.000000e+00 : f32
    %11 = vector.broadcast %cst_6 : f32 to vector<16x128xf32>
    %12 = arith.maximumf %10, %11 : vector<16x128xf32>
    %13 = math.absf %8 : vector<16x128xf32>
    %cst_7 = arith.constant 0.000000e+00 : f32
    %14 = vector.broadcast %cst_7 : f32 to vector<16x128xf32>
    %15 = arith.subf %14, %13 : vector<16x128xf32>
    %16 = math.exp %15 : vector<16x128xf32>
    %17 = math.log1p %16 : vector<16x128xf32>
    %18 = arith.addf %12, %17 : vector<16x128xf32>
    %cst_8 = arith.constant 0.000000e+00 : f32
    %19 = vector.broadcast %cst_8 : f32 to vector<16x128xf32>
    %20 = arith.subf %19, %18 : vector<16x128xf32>
    %21 = arith.subf %20, %8 : vector<16x128xf32>
    %cst_9 = arith.constant 0.000000e+00 : f32
    %22 = vector.broadcast %cst_9 : f32 to vector<16x128xf32>
    %23 = arith.cmpf oge, %7, %22 : vector<16x128xf32>
    %cst_10 = arith.constant 0.000000e+00 : f32
    %24 = vector.broadcast %cst_10 : f32 to vector<16x128xf32>
    %25 = arith.maximumf %7, %24 : vector<16x128xf32>
    %cst_11 = arith.constant 5.000000e-01 : f32
    %26 = vector.broadcast %cst_11 : f32 to vector<16x128xf32>
    %27 = arith.addf %25, %26 : vector<16x128xf32>
    %28 = math.log %27 : vector<16x128xf32>
    %cst_12 = arith.constant 0.000000e+00 : f32
    %29 = vector.broadcast %cst_12 : f32 to vector<16x128xf32>
    %30 = arith.subf %29, %7 : vector<16x128xf32>
    %cst_13 = arith.constant 0.000000e+00 : f32
    %31 = vector.broadcast %cst_13 : f32 to vector<16x128xf32>
    %32 = arith.maximumf %30, %31 : vector<16x128xf32>
    %33 = math.absf %7 : vector<16x128xf32>
    %cst_14 = arith.constant 0.000000e+00 : f32
    %34 = vector.broadcast %cst_14 : f32 to vector<16x128xf32>
    %35 = arith.subf %34, %33 : vector<16x128xf32>
    %36 = math.exp %35 : vector<16x128xf32>
    %37 = math.log1p %36 : vector<16x128xf32>
    %38 = arith.addf %32, %37 : vector<16x128xf32>
    %cst_15 = arith.constant 0.000000e+00 : f32
    %39 = vector.broadcast %cst_15 : f32 to vector<16x128xf32>
    %40 = arith.subf %39, %38 : vector<16x128xf32>
    %41 = arith.select %23, %28, %40 : vector<16x128xi1>, vector<16x128xf32>
    %42 = arith.addf %20, %41 : vector<16x128xf32>
    %c0_16 = arith.constant 0 : index
    %c0_17 = arith.constant 0 : index
    %43 = vector.load %arg9[%c0_16, %c0_17] : memref<16x16xf32, #tpu.memory_space<vmem>>, vector<16x16xf32>
    %cst_18 = arith.constant dense<0.000000e+00> : vector<16x128xf32>
    %44 = tpu.matmul %43, %21, %cst_18 {dimension_numbers = #tpu.dot_dimension_numbers<[1], [0], [0], [1], [0, 0, 1, 1], [], []>} : vector<16x16xf32>, vector<16x128xf32>, vector<16x128xf32> -> vector<16x128xf32>
    %c0_19 = arith.constant 0 : index
    %c0_20 = arith.constant 0 : index
    %45 = vector.load %arg6[%c0_19, %c0_20] : memref<1x128xf32, #tpu.memory_space<vmem>>, vector<1x128xf32>
    %46 = vector.broadcast %45 : vector<1x128xf32> to vector<16x128xf32>
    %47 = arith.addf %44, %46 : vector<16x128xf32>
    %c16_i32 = arith.constant 16 : i32
    %48 = arith.muli %arg2, %c16_i32 : i32
    %49 = tpu.iota {dimensions = array<i32: 0>} : vector<16x128xi32>
    %50 = vector.broadcast %48 : i32 to vector<16x128xi32>
    %51 = arith.addi %50, %49 : vector<16x128xi32>
    %c8_i32 = arith.constant 8 : i32
    %52 = vector.broadcast %c8_i32 : i32 to vector<16x128xi32>
    %53 = arith.cmpi slt, %51, %52 : vector<16x128xi32>
    %54 = arith.subf %42, %47 : vector<16x128xf32>
    %cst_21 = arith.constant -1.000000e+30 : f32
    %55 = vector.broadcast %cst_21 : f32 to vector<16x128xf32>
    %56 = arith.select %53, %54, %55 : vector<16x128xi1>, vector<16x128xf32>
    %c0_22 = arith.constant 0 : index
    %c0_23 = arith.constant 0 : index
    %57 = vector.load %arg7[%c0_22, %c0_23] : memref<1x128xf32, #tpu.memory_space<vmem>>, vector<1x128xf32>
    %cst_24 = arith.constant dense<0xFF800000> : vector<128xf32>
    %58 = vector.multi_reduction <maximumf>, %56, %cst_24 [0] : vector<16x128xf32> to vector<128xf32>
    %59 = vector.shape_cast %58 : vector<128xf32> to vector<1x128xf32>
    %60 = arith.maximumf %57, %59 : vector<1x128xf32>
    %c0_25 = arith.constant 0 : index
    %c0_26 = arith.constant 0 : index
    %61 = vector.load %arg8[%c0_25, %c0_26] : memref<1x128xf32, #tpu.memory_space<vmem>>, vector<1x128xf32>
    %62 = arith.subf %57, %60 : vector<1x128xf32>
    %63 = math.exp %62 : vector<1x128xf32>
    %64 = arith.mulf %61, %63 : vector<1x128xf32>
    %65 = vector.broadcast %60 : vector<1x128xf32> to vector<16x128xf32>
    %66 = arith.subf %56, %65 : vector<16x128xf32>
    %67 = math.exp %66 : vector<16x128xf32>
    %c0_27 = arith.constant 0 : index
    %c0_28 = arith.constant 0 : index
    %68 = vector.load %arg10[%c0_27, %c0_28] : memref<16x16xbf16, #tpu.memory_space<vmem>>, vector<16x16xbf16>
    %69 = arith.truncf %67 : vector<16x128xf32> to vector<16x128xbf16>
    %cst_29 = arith.constant dense<0.000000e+00> : vector<16x128xf32>
    %70 = tpu.matmul %68, %69, %cst_29 {dimension_numbers = #tpu.dot_dimension_numbers<[1], [0], [0], [1], [0, 0, 1, 1], [], []>} : vector<16x16xbf16>, vector<16x128xbf16>, vector<16x128xf32> -> vector<16x128xf32>
    %71 = vector.broadcast %64 : vector<1x128xf32> to vector<16x128xf32>
    %72 = arith.addf %70, %71 : vector<16x128xf32>
    %73 = vector.broadcast %60 : vector<1x128xf32> to vector<16x128xf32>
    %74 = arith.addf %47, %73 : vector<16x128xf32>
    %cst_30 = arith.constant 8.500000e+01 : f32
    %75 = vector.broadcast %cst_30 : f32 to vector<16x128xf32>
    %76 = arith.minimumf %74, %75 : vector<16x128xf32>
    %77 = math.exp %76 : vector<16x128xf32>
    %78 = arith.mulf %72, %77 : vector<16x128xf32>
    %c0_31 = arith.constant 0 : index
    %c0_32 = arith.constant 0 : index
    %c0_33 = arith.constant 0 : index
    %79 = vector.load %arg5[%c0_31, %c0_32, %c0_33] : memref<1x16x128xf32, #tpu.memory_space<vmem>>, vector<1x16x128xf32>
    %80 = vector.shape_cast %79 : vector<1x16x128xf32> to vector<16x128xf32>
    %81 = vector.shape_cast %78 : vector<16x128xf32> to vector<1x16x128xf32>
    tpu.vector_store %arg5[%c0_31, %c0_32, %c0_33], %81 {strides = array<i32>} : memref<1x16x128xf32, #tpu.memory_space<vmem>>, vector<1x16x128xf32>,
    %82 = vector.extract_strided_slice %47 {offsets = [15, 0], sizes = [1, 128], strides = [1, 1]} : vector<16x128xf32> to vector<1x128xf32>
    %c0_34 = arith.constant 0 : index
    %c0_35 = arith.constant 0 : index
    %83 = vector.load %arg6[%c0_34, %c0_35] : memref<1x128xf32, #tpu.memory_space<vmem>>, vector<1x128xf32>
    tpu.vector_store %arg6[%c0_34, %c0_35], %82 {strides = array<i32>} : memref<1x128xf32, #tpu.memory_space<vmem>>, vector<1x128xf32>,
    %c0_36 = arith.constant 0 : index
    %c0_37 = arith.constant 0 : index
    %84 = vector.load %arg7[%c0_36, %c0_37] : memref<1x128xf32, #tpu.memory_space<vmem>>, vector<1x128xf32>
    tpu.vector_store %arg7[%c0_36, %c0_37], %60 {strides = array<i32>} : memref<1x128xf32, #tpu.memory_space<vmem>>, vector<1x128xf32>,
    %85 = vector.extract_strided_slice %72 {offsets = [15, 0], sizes = [1, 128], strides = [1, 1]} : vector<16x128xf32> to vector<1x128xf32>
    %c0_38 = arith.constant 0 : index
    %c0_39 = arith.constant 0 : index
    %86 = vector.load %arg8[%c0_38, %c0_39] : memref<1x128xf32, #tpu.memory_space<vmem>>, vector<1x128xf32>
    tpu.vector_store %arg8[%c0_38, %c0_39], %85 {strides = array<i32>} : memref<1x128xf32, #tpu.memory_space<vmem>>, vector<1x128xf32>,
    return
  }
  func.func @transform_0(%arg0: i32, %arg1: i32, %arg2: i32) -> (i32, i32, i32) {
    %c0_i32 = arith.constant 0 : i32
    %c0_i32_0 = arith.constant 0 : i32
    return %arg0, %arg2, %c0_i32 : i32, i32, i32
  }
  func.func @transform_1(%arg0: i32, %arg1: i32, %arg2: i32) -> (i32, i32) {
    %c0_i32 = arith.constant 0 : i32
    %c0_i32_0 = arith.constant 0 : i32
    return %c0_i32, %arg1 : i32, i32
  }
  func.func @transform_2(%arg0: i32, %arg1: i32, %arg2: i32) -> (i32, i32, i32) {
    %c0_i32 = arith.constant 0 : i32
    return %arg0, %arg2, %arg1 : i32, i32, i32
  }
}

</mosaic_0001>

<llo_original>
// kernel: tpu_custom_call.1
$region0: #{tpu_custom_call.1}
  #allocation0 [shape = 'u32[]', space=smem, size = 0x4, offset = 0x4, fixed_abs, tag = 'smem constant byte address 0x4 - core index']
  #allocation1 [shape = 'u32[144,128]{1,0:T(1,128)}', space=vmem, size = 0x12000, scoped, tag = 'internal scratch']
  #allocation2 [shape = 'f32[1,128]{1,0:T(1,128)}', space=vmem, size = 0x200, scoped, tag = 'scratch operand']
  #allocation3 [shape = 'f32[1,128]{1,0:T(1,128)}', space=vmem, size = 0x200, scoped, tag = 'scratch operand']
  #allocation4 [shape = 'f32[1,128]{1,0:T(1,128)}', space=vmem, size = 0x200, scoped, tag = 'scratch operand']
  #allocation5 [shape = 'f32[16,16]{1,0:T(8,128)}', space=vmem, size = 0x2000, scoped, tag = 'scratch operand']
  #allocation6 [shape = 'bf16[16,16]{1,0:T(16,128)(2,1)}', space=vmem, size = 0x1000, scoped, tag = 'scratch operand']
  %s0 = inlined_call_operand.hbm [shape: bf16[2,16,32], index: 0, kind: input, shape index: {}]
  %s1 = inlined_call_operand.hbm [shape: bf16[32,256], index: 1, kind: input, shape index: {}]
  %s2 = inlined_call_operand.hbm [shape: f32[2,16,128], index: 2, kind: output, shape index: {}]
  %s3 = sld [smem:[#allocation0]]
  $region53: #{tpu_custom_call.1} parent=0
    _
  %s5 = ssub.s32 1, %s3
  %s6 = scalar_select 0, %s5, %s3
  $region1: #{tpu_custom_call.1} parent=0
    #allocation7 [shape = 'u8[8192]{0}', space=vmem, size = 0x2000, scoped, tag = 'input window, operand 0']
    #allocation8 [shape = 's32[2]{0}', space=sflag, size = 0x8, scoped, tag = 'scoped memory for tpu_custom_call.1']
    #allocation9 [shape = 's32[2]{0}', space=sflag, size = 0x8, scoped, tag = 'scoped memory for tpu_custom_call.1']
    #allocation10 [shape = 'u8[16384]{0}', space=vmem, size = 0x4000, scoped, tag = 'input window, operand 1, single buffered']
    #allocation11 [shape = 's32[1]{0}', space=sflag, size = 0x4, scoped, tag = 'scoped memory for tpu_custom_call.1']
    #allocation12 [shape = 'u8[16384]{0}', space=vmem, size = 0x4000, scoped, tag = 'output window, operand 0']
    %7 = vsyncpa [#allocation8], 0
    %s8 = scalar_lea.sflag [#allocation8], 1
    %9 = vsyncpa %s8, 0
    %10 = vsyncpa [#allocation11], 0
    %11 = vsyncpa [#allocation9], 0
    %s12 = scalar_lea.sflag [#allocation9], 1
    %13 = vsyncpa %s12, 0
    loop: start=0, step=1, limit=4
    $region2: #{tpu_custom_call.1} parent=1 // loop_pre_header
      _
    $region3: #{tpu_custom_call.1} parent=1 // loop_header
      %s15 = sphi 0, %s19
      %p16 = scmp.ge.s32.totalorder %s15, 4
      %s22 = sphi 0, %s41
      %s23 = sphi 0, %s37
      %s24 = sphi 0, %s33
      %s25 = sphi 0, %s22
      %s26 = sphi 0, %s23
      %s27 = sphi 0, %s24
      %s28 = sphi 0, %s25
      %s29 = sphi 0, %s26
      %s30 = sphi 0, %s27
      %s46 = sphi 0, %s48
      %s49 = sphi 0, %s46
      %s50 = sphi 0, %s49
      %s66 = sphi 0, %s50
      %s72 = sphi 0, %s74
      %s75 = sphi 0, %s72
      %s76 = sphi 0, %s75
      %s92 = sphi 0, %s76
      %s102 = sphi 0, %s104
      %s105 = sphi 0, %s102
      %s106 = sphi 0, %s105
      %s122 = sphi 0, %s106
    $region4: #{tpu_custom_call.1} parent=1 // loop_header_branch
      %18 = sbr.rel (%p16) target = $region8
    $region5: #{tpu_custom_call.1} parent=1 // loop_body
      %s20 = ssub.s32 %s15, 1
      %s21 = ssub.s32 %s15, 2
      %s31 = sadd.s32 1, %s24
      %p32 = scmp.ge.s32.totalorder %s31, 1
      %s33 = scalar_select %p32, 0, %s31
      %s34 = sadd.s32 1, %s23
      %s35 = scalar_select %p32, %s34, %s23
      %p36 = scmp.ge.s32.totalorder %s35, 1
      %s37 = scalar_select %p36, 0, %s35
      %s38 = sadd.s32 1, %s22
      %s39 = scalar_select %p36, %s38, %s22
      %p40 = scmp.ge.s32.totalorder %s39, 2
      %s41 = scalar_select %p40, 0, %s39
      %s42 = ssub.s32 %s22, %s41
      %s43 = ssub.s32 %s24, %s33
      %s44 = sor.u32 %s42, %s43
      %p45 = scmp.eq.s32.totalorder %s44, 0
      %s47 = sadd.s32 %s46, 1
      %s48 = scalar_select %p45, %s46, %s47
      %p51 = pneg %p45
      %p52 = scmp.eq.s32.totalorder %s15, 1
      %p53 = por %p51, %p52
      %p54 = scmp.ne.s32.totalorder %s46, %s49
      %p55 = scmp.eq.s32.totalorder %s15, 0
      %p56 = por %p54, %p55
      %p57 = scmp.ne.s32.totalorder %s46, %s49
      %p58 = scmp.eq.s32.totalorder %s20, 1
      %p59 = por %p57, %p58
      %p60 = scmp.ne.s32.totalorder %s49, %s50
      %p61 = scmp.eq.s32.totalorder %s20, 0
      %p62 = por %p60, %p61
      %p63 = scmp.ne.s32.totalorder %s49, %s50
      %p64 = scmp.eq.s32.totalorder %s21, 1
      %p65 = por %p63, %p64
      %p67 = scmp.ne.s32.totalorder %s50, %s66
      %p68 = scmp.eq.s32.totalorder %s21, 0
      %p69 = por %p67, %p68
      %s70 = ssub.s32 %s23, %s37
      %p71 = scmp.eq.s32.totalorder %s70, 0
      %s73 = sadd.s32 %s72, 1
      %s74 = scalar_select %p71, %s72, %s73
      %p77 = pneg %p71
      %p78 = scmp.eq.s32.totalorder %s15, 1
      %p79 = por %p77, %p78
      %p80 = scmp.ne.s32.totalorder %s72, %s75
      %p81 = scmp.eq.s32.totalorder %s15, 0
      %p82 = por %p80, %p81
      %p83 = scmp.ne.s32.totalorder %s72, %s75
      %p84 = scmp.eq.s32.totalorder %s20, 1
      %p85 = por %p83, %p84
      %p86 = scmp.ne.s32.totalorder %s75, %s76
      %p87 = scmp.eq.s32.totalorder %s20, 0
      %p88 = por %p86, %p87
      %p89 = scmp.ne.s32.totalorder %s75, %s76
      %p90 = scmp.eq.s32.totalorder %s21, 1
      %p91 = por %p89, %p90
      %p93 = scmp.ne.s32.totalorder %s76, %s92
      %p94 = scmp.eq.s32.totalorder %s21, 0
      %p95 = por %p93, %p94
      %s96 = ssub.s32 %s22, %s41
      %s97 = ssub.s32 %s24, %s33
      %s98 = sor.u32 %s96, %s97
      %s99 = ssub.s32 %s23, %s37
      %s100 = sor.u32 %s98, %s99
      %p101 = scmp.eq.s32.totalorder %s100, 0
      %s103 = sadd.s32 %s102, 1
      %s104 = scalar_select %p101, %s102, %s103
      %p107 = pneg %p101
      %p108 = scmp.eq.s32.totalorder %s15, 1
      %p109 = por %p107, %p108
      %p110 = scmp.ne.s32.totalorder %s102, %s105
      %p111 = scmp.eq.s32.totalorder %s15, 0
      %p112 = por %p110, %p111
      %p113 = scmp.ne.s32.totalorder %s102, %s105
      %p114 = scmp.eq.s32.totalorder %s20, 1
      %p115 = por %p113, %p114
      %p116 = scmp.ne.s32.totalorder %s105, %s106
      %p117 = scmp.eq.s32.totalorder %s20, 0
      %p118 = por %p116, %p117
      %p119 = scmp.ne.s32.totalorder %s105, %s106
      %p120 = scmp.eq.s32.totalorder %s21, 1
      %p121 = por %p119, %p120
      %p123 = scmp.ne.s32.totalorder %s106, %s122
      %p124 = scmp.eq.s32.totalorder %s21, 0
      %p125 = por %p123, %p124
      %p126 = scmp.le.s32.totalorder 1, %s15
      %p127 = scmp.lt.s32.totalorder %s15, 3
      %p128 = pnand %p126, %p127
      %p129 = pneg %p128
      // Predicated region
      $region9: #{tpu_custom_call.1} parent=5 // pred_check
        _
      $region10: #{tpu_custom_call.1} parent=5 // pred_check_branch
        %131 = sbr.rel (%p128) target = $region12
      $region11: #{tpu_custom_call.1} parent=5 // pred_region
        %s132 = ssub.s32 %s15, 1
        // Predicated region
        $region13: #{tpu_custom_call.1} parent=11 // pred_check
          %p133 = pneg %p88
        $region14: #{tpu_custom_call.1} parent=11 // pred_check_branch
          %135 = sbr.rel (%p133) target = $region16
        $region15: #{tpu_custom_call.1} parent=11 // pred_region
          %s136 = smul.u32 2, %s26
          %s138 = ssub.s32 512, 512
          %139 = vsyncadd [#allocation11], %s138
          %s140 = smul.addr %s136, 64
          %s141 = scalar_lea.hbm %s1, %s140
          %s142 = sshll.u32 [#allocation10], 4
          %s143 = int_to_ptr.vmem [resolvable:$true] %s142
          %148 = dma.hbm_to_vmem [thread:$0]  %s141, 512, %s143, [#allocation11], 128, 128, 8
        $region16: #{tpu_custom_call.1} parent=11 // pred_fallthru
          _
      $region12: #{tpu_custom_call.1} parent=5 // pred_fallthru
        _
      %p149 = scmp.lt.s32.totalorder %s15, 2
      // Predicated region
      $region17: #{tpu_custom_call.1} parent=5 // pred_check
        %p150 = pneg %p149
      $region18: #{tpu_custom_call.1} parent=5 // pred_check_branch
        %152 = sbr.rel (%p150) target = $region20
      $region19: #{tpu_custom_call.1} parent=5 // pred_region
        // Predicated region
        $region21: #{tpu_custom_call.1} parent=19 // pred_check
          %p153 = pneg %p56
        $region22: #{tpu_custom_call.1} parent=19 // pred_check_branch
          %155 = sbr.rel (%p153) target = $region24
        $region23: #{tpu_custom_call.1} parent=19 // pred_region
          %s156 = sand.u32 %s46, 1
          %s157 = scalar_lea.sflag [#allocation8], %s156
          %s158 = sand.u32 %s46, 1
          %s159 = smul.addr %s158, 8
          %s160 = scalar_lea.vmem [#allocation7], %s159
          %s161 = smul.u32 2, %s24
          %s163 = ssub.s32 128, 128
          %164 = vsyncadd %s157, %s163
          %s165 = smul.addr %s22, 2
          %s166 = sadd.s32 %s161, %s165
          %s167 = smul.addr %s166, 64
          %s168 = scalar_lea.hbm %s0, %s167
          %s169 = sshll.u32 %s160, 4
          %s170 = int_to_ptr.vmem [resolvable:$true] %s169
          %175 = dma.hbm_to_vmem [thread:$0]  %s168, 128, %s170, %s157, 64, 64, 4
        $region24: #{tpu_custom_call.1} parent=19 // pred_fallthru
          _
      $region20: #{tpu_custom_call.1} parent=5 // pred_fallthru
        _
      %p176 = scmp.le.s32.totalorder 1, %s15
      %p177 = scmp.lt.s32.totalorder %s15, 3
      %p178 = pnand %p176, %p177
      %p179 = pneg %p178
      // Predicated region
      $region25: #{tpu_custom_call.1} parent=5 // pred_check
        _
      $region26: #{tpu_custom_call.1} parent=5 // pred_check_branch
        %181 = sbr.rel (%p178) target = $region28
      $region27: #{tpu_custom_call.1} parent=5 // pred_region
        %s182 = ssub.s32 %s15, 1
        %s183 = sand.u32 %s49, 1
        %s184 = scalar_lea.sflag [#allocation8], %s183
        %s185 = sand.u32 %s49, 1
        %s186 = smul.addr %s185, 8
        %s187 = scalar_lea.vmem [#allocation7], %s186
        // Predicated region
        $region29: #{tpu_custom_call.1} parent=27 // pred_check
          %p188 = pneg %p62
        $region30: #{tpu_custom_call.1} parent=27 // pred_check_branch
          %190 = sbr.rel (%p188) target = $region32
        $region31: #{tpu_custom_call.1} parent=27 // pred_region
          %191 = dma.done %s184, 128
        $region32: #{tpu_custom_call.1} parent=27 // pred_fallthru
          _
        // Predicated region
        $region33: #{tpu_custom_call.1} parent=27 // pred_check
          %p192 = pneg %p88
        $region34: #{tpu_custom_call.1} parent=27 // pred_check_branch
          %194 = sbr.rel (%p192) target = $region36
        $region35: #{tpu_custom_call.1} parent=27 // pred_region
          %195 = dma.done [#allocation11], 512
        $region36: #{tpu_custom_call.1} parent=27 // pred_fallthru
          _
        %s196 = sand.u32 %s49, 1
        %s197 = scalar_lea.sflag [#allocation8], %s196
        %s198 = sand.u32 %s49, 1
        %s199 = smul.addr %s198, 8
        %s200 = scalar_lea.vmem [#allocation7], %s199
        %p201 = pneg %p62
        %p202 = pneg %p59
        %p203 = pneg %p88
        %p204 = pneg %p85
        %p205 = pneg %p118
        %p206 = pneg %p115
        %s207 = sand.u32 %s105, 1
        %s208 = scalar_lea.sflag [#allocation9], %s207
        %s209 = sand.u32 %s105, 1
        %s210 = smul.addr %s209, 16
        %s211 = scalar_lea.vmem [#allocation12], %s210
        %s212 = smul.u32 2, %s27
        %s213 = smul.u32 2, %s26
        %s214 = smul.u32 2, %s27
        %p216 = scmp.eq.s32.totalorder %s27, 0
        // Predicated region
        $region37: #{tpu_custom_call.1} parent=27 // pred_check
          %p217 = pneg %p216
        $region38: #{tpu_custom_call.1} parent=27 // pred_check_branch
          %219 = sbr.rel (%p217) target = $region40
        $region39: #{tpu_custom_call.1} parent=27 // pred_region
          %220 = vst [vmem:[#allocation2] sm:$0x1] 0.0
          %221 = vst [vmem:[#allocation3] sm:$0x1] -1e+30
          %222 = vst [vmem:[#allocation4] sm:$0x1] 0.0
          %v223 = vlaneseq
          %v224 = vshrl.u32 %v223, 7
          %v225 = vadd.s32 %v224, 8
          %v226 = vlaneseq
          %v227 = vand.u32 %v226, 127
          %vm228 = vcmp.ge.s32.totalorder %v224, %v227
          %vm229 = vcmp.ge.s32.totalorder %v225, %v227
          %v230 = vsel %vm228, 1.0, 0.0
          %v231 = vsel %vm229, 1.0, 0.0
          %vm232 = vcmask 130048
          %233 = vst.msk [vmem:[#allocation5] sm:$0xff] %vm232, %v230
          %234 = vst.msk [vmem:[#allocation5 + $0x8] sm:$0xff] %vm232, %v231
          %v235 = vpack.c.bf16 %v231, %v230
          %236 = vst.msk [vmem:[#allocation6] sm:$0xff] %vm232, %v235
        $region40: #{tpu_custom_call.1} parent=27 // pred_fallthru
          _
        %v237 = vld [vmem:[%s187] sm:$0xf]
        %v238 = vld [vmem:[%s187 + $0x4] sm:$0xf]
        %v239 = vld [vmem:[#allocation10] sm:$0xff]
        %v240 = vld [vmem:[#allocation10 + $0x8] sm:$0xff]
        %v241 = vld [vmem:[#allocation10 + $0x10] sm:$0xff]
        %v242 = vld [vmem:[#allocation10 + $0x18] sm:$0xff]
        %v245 = vunpack.c.l.b16 %v237
        %v246 = vunpack.c.l.b16 %v238
        %v247 = vpack.c.b16 %v246, %v245
        %v252 = vunpack.c.l.b16 %v239
        %v253 = vunpack.c.h.b16 %v239
        %v254 = vunpack.c.l.b16 %v240
        %v255 = vunpack.c.h.b16 %v240
        %v256 = vunpack.c.l.b16 %v241
        %v257 = vunpack.c.h.b16 %v241
        %v258 = vunpack.c.l.b16 %v242
        %v259 = vunpack.c.h.b16 %v242
        %v260 = vpack.c.b16 %v254, %v252
        %v261 = vpack.c.b16 %v255, %v253
        %v262 = vpack.c.b16 %v258, %v256
        %v263 = vpack.c.b16 %v259, %v257
        %vm268 = vcmask 261120
        %v270 = vsel %vm268, %v247, 0
        %272 = vmatprep.subr.bf16.mxu0 %v261
        %273 = vmatpush1.bf16.msra.mxu0 %v260
        %274 = vmatprep.subr.bf16.mxu0 %v263
        %275 = vmatpush1.bf16.msra.mxu0 %v262
        %276 = vmatprep.subr.bf16.mxu0 0
        %277 = vmatpush1.bf16.msra.mxu0 0
        %278 = vmatprep.subr.bf16.mxu0 0
        %279 = vmatpush1.bf16.msra.mxu0 0
        %280 = vmatprep.subr.bf16.mxu0 0
        %281 = vmatpush1.bf16.msra.mxu0 0
        %282 = vmatprep.subr.bf16.mxu0 0
        %283 = vmatpush1.bf16.msra.mxu0 0
        %284 = vmatprep.subr.bf16.mxu0 0
        %285 = vmatpush1.bf16.msra.mxu0 0
        %286 = vmatprep.subr.bf16.mxu0 0
        %287 = vmatpush1.bf16.msra.mxu0 0
        %288 = vmatprep.subr.bf16.mxu0 0
        %289 = vmatpush1.bf16.msra.mxu0 0
        %290 = vmatprep.subr.bf16.mxu0 0
        %291 = vmatpush1.bf16.msra.mxu0 0
        %292 = vmatprep.subr.bf16.mxu0 0
        %293 = vmatpush1.bf16.msra.mxu0 0
        %294 = vmatprep.subr.bf16.mxu0 0
        %295 = vmatpush1.bf16.msra.mxu0 0
        %296 = vmatprep.subr.bf16.mxu0 0
        %297 = vmatpush1.bf16.msra.mxu0 0
        %298 = vmatprep.subr.bf16.mxu0 0
        %299 = vmatpush1.bf16.msra.mxu0 0
        %300 = vmatprep.subr.bf16.mxu0 0
        %301 = vmatpush1.bf16.msra.mxu0 0
        %302 = vmatprep.subr.bf16.mxu0 0
        %303 = vmatpush1.bf16.msra.mxu0 0
        %304 = vmatprep.mubr.bf16.mxu0 0
        %305 = vmatmul.mubr.bf16.gmra.mrb[0].mxu0 %v270
        %v306 = vpop.f32.mrb[0].mxu0
        %v307 = vadd.f32 0.0, %v306
        %v308 = vpop.f32.mrb[0].mxu0
        %v309 = vadd.f32 0.0, %v308
        %v310 = vpop.f32.mrb[0].mxu0
        %v311 = vadd.f32 0.0, %v310
        %v312 = vpop.f32.mrb[0].mxu0
        %v313 = vadd.f32 0.0, %v312
        %314 = vdwg.mxu0
        %v315 = vsub.f32 0.0, %v309
        %v316 = vsub.f32 0.0, %v313
        %v317 = vmax.f32 %v315, 0.0
        %v318 = vmax.f32 %v316, 0.0
        %v319 = vand.u32 2147483647, %v309
        %v320 = vand.u32 2147483647, %v313
        %v321 = vsub.f32 0.0, %v319
        %v322 = vsub.f32 0.0, %v320
        %v323 = vmul.f32 %v321, 1.442695
        %v324 = vpow.pop %v323
        %v325 = vmul.f32 %v322, 1.442695
        %v326 = vpow.pop %v325
        %v327 = vadd.f32 %v324, 1.0
        %v328 = vlog2.pop %v327
        %v329 = vmul.f32 %v328, 0.6931472
        %v330 = vmul.f32 -0.5, %v324
        %v331 = vadd.f32 %v330, 1.0
        %v332 = vmul.f32 %v331, %v324
        %v333 = vand.u32 2147483647, %v324
        %vm334 = vcmp.lt.f32.partialorder %v333, 0.0004427343
        %v335 = vsel %vm334, %v332, %v329
        %v336 = vadd.f32 %v326, 1.0
        %v337 = vlog2.pop %v336
        %v338 = vmul.f32 %v337, 0.6931472
        %v339 = vmul.f32 -0.5, %v326
        %v340 = vadd.f32 %v339, 1.0
        %v341 = vmul.f32 %v340, %v326
        %v342 = vand.u32 2147483647, %v326
        %vm343 = vcmp.lt.f32.partialorder %v342, 0.0004427343
        %v344 = vsel %vm343, %v341, %v338
        %v345 = vadd.f32 %v317, %v335
        %v346 = vadd.f32 %v318, %v344
        %v347 = vsub.f32 0.0, %v345
        %v348 = vsub.f32 0.0, %v346
        %v349 = vsub.f32 %v347, %v309
        %v350 = vsub.f32 %v348, %v313
        %vm351 = vcmp.ge.f32.partialorder %v307, 0.0
        %vm352 = vcmp.ge.f32.partialorder %v311, 0.0
        %v353 = vmax.f32 %v307, 0.0
        %v354 = vmax.f32 %v311, 0.0
        %v355 = vadd.f32 %v353, 0.5
        %v356 = vadd.f32 %v354, 0.5
        %v357 = vlog2.pop %v355
        %v358 = vmul.f32 %v357, 0.6931472
        %v359 = vlog2.pop %v356
        %v360 = vmul.f32 %v359, 0.6931472
        %v361 = vsub.f32 0.0, %v307
        %v362 = vsub.f32 0.0, %v311
        %v363 = vmax.f32 %v361, 0.0
        %v364 = vmax.f32 %v362, 0.0
        %v365 = vand.u32 2147483647, %v307
        %v366 = vand.u32 2147483647, %v311
        %v367 = vsub.f32 0.0, %v365
        %v368 = vsub.f32 0.0, %v366
        %v369 = vmul.f32 %v367, 1.442695
        %v370 = vpow.pop %v369
        %v371 = vmul.f32 %v368, 1.442695
        %v372 = vpow.pop %v371
        %v373 = vadd.f32 %v370, 1.0
        %v374 = vlog2.pop %v373
        %v375 = vmul.f32 %v374, 0.6931472
        %v376 = vmul.f32 -0.5, %v370
        %v377 = vadd.f32 %v376, 1.0
        %v378 = vmul.f32 %v377, %v370
        %v379 = vand.u32 2147483647, %v370
        %vm380 = vcmp.lt.f32.partialorder %v379, 0.0004427343
        %v381 = vsel %vm380, %v378, %v375
        %v382 = vadd.f32 %v372, 1.0
        %v383 = vlog2.pop %v382
        %v384 = vmul.f32 %v383, 0.6931472
        %v385 = vmul.f32 -0.5, %v372
        %v386 = vadd.f32 %v385, 1.0
        %v387 = vmul.f32 %v386, %v372
        %v388 = vand.u32 2147483647, %v372
        %vm389 = vcmp.lt.f32.partialorder %v388, 0.0004427343
        %v390 = vsel %vm389, %v387, %v384
        %v391 = vadd.f32 %v363, %v381
        %v392 = vadd.f32 %v364, %v390
        %v393 = vsub.f32 0.0, %v391
        %v394 = vsub.f32 0.0, %v392
        %v395 = vsel %vm351, %v358, %v393
        %v396 = vsel %vm352, %v360, %v394
        %v397 = vadd.f32 %v347, %v395
        %v398 = vadd.f32 %v348, %v396
        %v399 = vld [vmem:[#allocation5] sm:$0xff]
        %v400 = vld [vmem:[#allocation5 + $0x8] sm:$0xff]
        %v401 = vld [vmem:[#allocation2] sm:$0x1]
        %v403 = vlaneseq
        %v404 = vshrl.u32 %v403, 7
        %v405 = vsub.s32 0, %v404
        %v406 = vrot.slane %v401, %v405
        %vm408 = vcmask 130048
        %v410 = vsel %vm408, %v399, 0
        %v413 = vsel %vm408, %v400, 0
        %415 = vmatprep.subr.mxu0 0.0
        %416 = vmatpush1.msra.mxu0 %v349
        %417 = vmatprep.subr.mxu0 0.0
        %418 = vmatpush1.msra.mxu0 %v350
        %419 = vmatprep.subr.mxu0 0.0
        %420 = vmatpush1.msra.mxu0 0.0
        %421 = vmatprep.subr.mxu0 0.0
        %422 = vmatpush1.msra.mxu0 0.0
        %423 = vmatprep.subr.mxu0 0.0
        %424 = vmatpush1.msra.mxu0 0.0
        %425 = vmatprep.subr.mxu0 0.0
        %426 = vmatpush1.msra.mxu0 0.0
        %427 = vmatprep.subr.mxu0 0.0
        %428 = vmatpush1.msra.mxu0 0.0
        %429 = vmatprep.subr.mxu0 0.0
        %430 = vmatpush1.msra.mxu0 0.0
        %431 = vmatprep.subr.mxu0 0.0
        %432 = vmatpush1.msra.mxu0 0.0
        %433 = vmatprep.subr.mxu0 0.0
        %434 = vmatpush1.msra.mxu0 0.0
        %435 = vmatprep.subr.mxu0 0.0
        %436 = vmatpush1.msra.mxu0 0.0
        %437 = vmatprep.subr.mxu0 0.0
        %438 = vmatpush1.msra.mxu0 0.0
        %439 = vmatprep.subr.mxu0 0.0
        %440 = vmatpush1.msra.mxu0 0.0
        %441 = vmatprep.subr.mxu0 0.0
        %442 = vmatpush1.msra.mxu0 0.0
        %443 = vmatprep.subr.mxu0 0.0
        %444 = vmatpush1.msra.mxu0 0.0
        %445 = vmatprep.subr.mxu0 0.0
        %446 = vmatpush1.msra.mxu0 0.0
        %447 = vmatprep.subr.mxu0 0.0
        %448 = vmatpush1.msra.mxu0 0.0
        %449 = vmatprep.subr.mxu0 0.0
        %450 = vmatpush1.msra.mxu0 0.0
        %451 = vmatprep.subr.mxu0 0.0
        %452 = vmatpush1.msra.mxu0 0.0
        %453 = vmatprep.subr.mxu0 0.0
        %454 = vmatpush1.msra.mxu0 0.0
        %455 = vmatprep.subr.mxu0 0.0
        %456 = vmatpush1.msra.mxu0 0.0
        %457 = vmatprep.subr.mxu0 0.0
        %458 = vmatpush1.msra.mxu0 0.0
        %459 = vmatprep.subr.mxu0 0.0
        %460 = vmatpush1.msra.mxu0 0.0
        %461 = vmatprep.subr.mxu0 0.0
        %462 = vmatpush1.msra.mxu0 0.0
        %463 = vmatprep.subr.mxu0 0.0
        %464 = vmatpush1.msra.mxu0 0.0
        %465 = vmatprep.subr.mxu0 0.0
        %466 = vmatpush1.msra.mxu0 0.0
        %467 = vmatprep.subr.mxu0 0.0
        %468 = vmatpush1.msra.mxu0 0.0
        %469 = vmatprep.subr.mxu0 0.0
        %470 = vmatpush1.msra.mxu0 0.0
        %471 = vmatprep.subr.mxu0 0.0
        %472 = vmatpush1.msra.mxu0 0.0
        %473 = vmatprep.subr.mxu0 0.0
        %474 = vmatpush1.msra.mxu0 0.0
        %475 = vmatprep.subr.mxu0 0.0
        %476 = vmatpush1.msra.mxu0 0.0
        %477 = vmatprep.subr.mxu0 0.0
        %478 = vmatpush1.msra.mxu0 0.0
        %479 = vmatprep.mubr.f32.mxu0 0.0
        %480 = vmatmul.mubr.f32.gmra.mrb[0].mxu0 %v410
        %v481 = vpop.f32.mrb[0].mxu0
        %v482 = vadd.f32 %v406, %v481
        %v483 = vpop.f32.mrb[0].mxu0
        %484 = vmatprep.mubr.f32.mxu0 0.0
        %485 = vmatmul.mubr.f32.gmra.mrb[0].mxu0 %v413
        %v486 = vpop.f32.mrb[0].mxu0
        %v487 = vadd.f32 %v406, %v486
        %v488 = vpop.f32.mrb[0].mxu0
        %489 = vdwg.mxu0
        %s490 = smul.u32 %s27, 16
        %v491 = vlaneseq
        %v492 = vshrl.u32 %v491, 7
        %v493 = vadd.s32 %v492, 8
        %v494 = vstv %s490
        %v495 = vadd.s32 %v494, %v492
        %v496 = vadd.s32 %v494, %v493
        %vm497 = vcmp.lt.s32.totalorder %v495, 8
        %vm498 = vcmp.lt.s32.totalorder %v496, 8
        %v499 = vsub.f32 %v397, %v482
        %v500 = vsub.f32 %v398, %v487
        %v501 = vsel %vm497, %v499, -1e+30
        %v502 = vsel %vm498, %v500, -1e+30
        %v503 = vld [vmem:[#allocation3] sm:$0x1]
        %v504 = vmax.f32 %v501, %v502
        %v505 = vrot.slane %v504, 4
        %v506 = vmax.f32 %v504, %v505
        %v507 = vrot.slane %v506, 2
        %v508 = vmax.f32 %v506, %v507
        %v509 = vrot.slane %v508, 1
        %v510 = vmax.f32 %v508, %v509
        %v511 = vmax.f32 %v503, %v510
        %v512 = vld [vmem:[#allocation4] sm:$0x1]
        %v513 = vsub.f32 %v503, %v511
        %v514 = vmul.f32 %v513, 1.442695
        %v515 = vpow.pop %v514
        %v516 = vmul.f32 %v512, %v515
        %v518 = vlaneseq
        %v519 = vshrl.u32 %v518, 7
        %v520 = vsub.s32 0, %v519
        %v521 = vrot.slane %v511, %v520
        %v523 = vsub.f32 %v501, %v521
        %v524 = vsub.f32 %v502, %v521
        %v525 = vmul.f32 %v523, 1.442695
        %v526 = vpow.pop %v525
        %v527 = vmul.f32 %v524, 1.442695
        %v528 = vpow.pop %v527
        %v529 = vld [vmem:[#allocation6] sm:$0xff]
        %v530 = vpack.c.bf16 %v528, %v526
        %v532 = vlaneseq
        %v533 = vshrl.u32 %v532, 7
        %v534 = vsub.s32 0, %v533
        %v535 = vrot.slane %v516, %v534
        %v538 = vsel %vm408, %v529, 0
        %540 = vmatprep.subr.bf16.mxu0 0
        %541 = vmatpush1.bf16.msra.mxu0 %v530
        %542 = vmatprep.subr.bf16.mxu0 0
        %543 = vmatpush1.bf16.msra.mxu0 0
        %544 = vmatprep.subr.bf16.mxu0 0
        %545 = vmatpush1.bf16.msra.mxu0 0
        %546 = vmatprep.subr.bf16.mxu0 0
        %547 = vmatpush1.bf16.msra.mxu0 0
        %548 = vmatprep.subr.bf16.mxu0 0
        %549 = vmatpush1.bf16.msra.mxu0 0
        %550 = vmatprep.subr.bf16.mxu0 0
        %551 = vmatpush1.bf16.msra.mxu0 0
        %552 = vmatprep.subr.bf16.mxu0 0
        %553 = vmatpush1.bf16.msra.mxu0 0
        %554 = vmatprep.subr.bf16.mxu0 0
        %555 = vmatpush1.bf16.msra.mxu0 0
        %556 = vmatprep.subr.bf16.mxu0 0
        %557 = vmatpush1.bf16.msra.mxu0 0
        %558 = vmatprep.subr.bf16.mxu0 0
        %559 = vmatpush1.bf16.msra.mxu0 0
        %560 = vmatprep.subr.bf16.mxu0 0
        %561 = vmatpush1.bf16.msra.mxu0 0
        %562 = vmatprep.subr.bf16.mxu0 0
        %563 = vmatpush1.bf16.msra.mxu0 0
        %564 = vmatprep.subr.bf16.mxu0 0
        %565 = vmatpush1.bf16.msra.mxu0 0
        %566 = vmatprep.subr.bf16.mxu0 0
        %567 = vmatpush1.bf16.msra.mxu0 0
        %568 = vmatprep.subr.bf16.mxu0 0
        %569 = vmatpush1.bf16.msra.mxu0 0
        %570 = vmatprep.subr.bf16.mxu0 0
        %571 = vmatpush1.bf16.msra.mxu0 0
        %572 = vmatprep.mubr.bf16.mxu0 0
        %573 = vmatmul.mubr.bf16.gmra.mrb[0].mxu0 %v538
        %v574 = vpop.f32.mrb[0].mxu0
        %v575 = vadd.f32 %v535, %v574
        %v576 = vpop.f32.mrb[0].mxu0
        %v577 = vpop.f32.mrb[0].mxu0
        %v578 = vadd.f32 %v535, %v577
        %v579 = vpop.f32.mrb[0].mxu0
        %580 = vdwg.mxu0
        %v581 = vadd.f32 %v482, %v521
        %v582 = vadd.f32 %v487, %v521
        %v583 = vmin.f32 %v581, 85.0
        %v584 = vmin.f32 %v582, 85.0
        %v585 = vmul.f32 %v583, 1.442695
        %v586 = vpow.pop %v585
        %v587 = vmul.f32 %v584, 1.442695
        %v588 = vpow.pop %v587
        %v589 = vmul.f32 %v575, %v586
        %v590 = vmul.f32 %v578, %v588
        %591 = vst [vmem:[%s211] sm:$0xff] %v589
        %592 = vst [vmem:[%s211 + $0x8] sm:$0xff] %v590
        %593 = vst [vmem:[#allocation2 - $0x7] sm:$0x80] %v487
        %594 = vst [vmem:[#allocation3] sm:$0x1] %v511
        %595 = vst [vmem:[#allocation4 - $0x7] sm:$0x80] %v578
        %s596 = sand.u32 %s105, 1
        %s597 = scalar_lea.sflag [#allocation9], %s596
        %s598 = sand.u32 %s105, 1
        %s599 = smul.addr %s598, 16
        %s600 = scalar_lea.vmem [#allocation12], %s599
        // Predicated region
        $region41: #{tpu_custom_call.1} parent=27 // pred_check
          %p601 = pneg %p115
        $region42: #{tpu_custom_call.1} parent=27 // pred_check_branch
          %603 = sbr.rel (%p601) target = $region44
        $region43: #{tpu_custom_call.1} parent=27 // pred_region
          %s604 = smul.u32 2, %s27
          %s606 = ssub.s32 256, 256
          %607 = vsyncadd %s597, %s606
          %s608 = sadd.s32 %s26, %s604
          %s609 = smul.addr %s25, 2
          %s610 = sadd.s32 %s608, %s609
          %s611 = smul.addr %s610, 128
          %s612 = scalar_lea.hbm %s2, %s611
          %s613 = sshll.u32 %s600, 4
          %s614 = int_to_ptr.vmem [resolvable:$true] %s613
          %619 = dma.vmem_to_hbm [thread:$0]  %s614, 256, %s612, %s597, 128, 128, 8
        $region44: #{tpu_custom_call.1} parent=27 // pred_fallthru
          _
      $region28: #{tpu_custom_call.1} parent=5 // pred_fallthru
        _
      %p620 = scmp.le.s32.totalorder 2, %s15
      // Predicated region
      $region45: #{tpu_custom_call.1} parent=5 // pred_check
        %p621 = pneg %p620
      $region46: #{tpu_custom_call.1} parent=5 // pred_check_branch
        %623 = sbr.rel (%p621) target = $region48
      $region47: #{tpu_custom_call.1} parent=5 // pred_region
        %s624 = ssub.s32 %s15, 2
        // Predicated region
        $region49: #{tpu_custom_call.1} parent=47 // pred_check
          %p625 = pneg %p121
        $region50: #{tpu_custom_call.1} parent=47 // pred_check_branch
          %627 = sbr.rel (%p625) target = $region52
        $region51: #{tpu_custom_call.1} parent=47 // pred_region
          %s628 = sand.u32 %s106, 1
          %s629 = scalar_lea.sflag [#allocation9], %s628
          %s630 = sand.u32 %s106, 1
          %s631 = smul.addr %s630, 16
          %s632 = scalar_lea.vmem [#allocation12], %s631
          %633 = dma.done %s629, 256
        $region52: #{tpu_custom_call.1} parent=47 // pred_fallthru
          _
      $region48: #{tpu_custom_call.1} parent=5 // pred_fallthru
        _
    $region6: #{tpu_custom_call.1} parent=1 // loop_footer
      %s19 = sadd.s32 1, %s15
    $region7: #{tpu_custom_call.1} parent=1 // loop_footer_branch
      %14 = sbr.rel target = $region3
    $region8: #{tpu_custom_call.1} parent=1 // loop_exit
      _
    %634 = vsyncpa [#allocation8], 1
    %s635 = scalar_lea.sflag [#allocation8], 1
    %636 = vsyncpa %s635, 1
    %637 = vsyncpa [#allocation11], 1
    %638 = vsyncpa [#allocation9], 1
    %s639 = scalar_lea.sflag [#allocation9], 1
    %640 = vsyncpa %s639, 1

</llo_original>
